<compile_context>
chip_gen: v7x
topology: tpu7x:2x2x1
jax: 0.10.0
libtpu: 0.0.40
codegen_flags: <defaults>
</compile_context>

<pallas_src>
import functools

import jax
import jax.numpy as jnp
from jax import lax
from jax.experimental import pallas as pl
from jax.experimental.pallas import tpu as pltpu
import numpy as np

_EPS_COS = 1e-8   # F.cosine_similarity default eps (applied to the norms)
_EPS_SIM = 1e-6


def _ge2e_kernel(w_ref, b_ref, emb_ref, out_ref, *, n_spk, n_utt, n_pad):
    emb = emb_ref[...]                               # (NM, D_pad) float32
    nm = n_spk * n_utt
    w = w_ref[0]
    b_eff = w * _EPS_SIM + b_ref[0]                  # fold cossim += 1e-6 into bias

    inv_m = 1.0 / n_utt
    inv_m1 = 1.0 / (n_utt - 1)
    inv_m1_sq = inv_m1 * inv_m1
    eps2 = _EPS_COS * _EPS_COS

    # ---- lane-dense (NM, N_pad) index plane --------------------------------
    row_id = lax.broadcasted_iota(jnp.int32, (nm, n_pad), 0)
    col_id = lax.broadcasted_iota(jnp.int32, (nm, n_pad), 1)
    col_m = col_id * n_utt
    # diag_mask[row, k] == (k == row // M)  (multiply/compare form, no int div)
    diag_mask = jnp.logical_and(col_m <= row_id, row_id < col_m + n_utt)
    col_valid = col_id < n_spk

    # The same mask is the speaker-aggregation matrix for the centroid matmul.
    g = diag_mask.astype(jnp.float32)                # (NM, N_pad)

    # ---- centroids^T via TN matmul: cent_t[d, k] = mean over spk-k rows -----
    cent_t = lax.dot_general(emb, g, (((0,), (0,)), ((), ())),
                             preferred_element_type=jnp.float32) * inv_m
    # (D_pad, N_pad); padded class columns are exactly zero.

    # ---- dots[row, k] = emb[row] . centroid[k]  (NN matmul, lane-dense out) -
    dots = lax.dot_general(emb, cent_t, (((1,), (0,)), ((), ())),
                           preferred_element_type=jnp.float32)   # (NM, N_pad)

    # ---- squared norms + EUP rsqrt (no sqrt / divide on the VPU) ------------
    e2 = jnp.sum(emb * emb, axis=1, keepdims=True)                 # (NM, 1)
    c2 = jnp.sum(cent_t * cent_t, axis=0, keepdims=True)           # (1, N_pad)
    r_e = lax.rsqrt(jnp.maximum(e2, eps2))    # == 1 / max(|emb|, eps)
    r_c = lax.rsqrt(jnp.maximum(c2, eps2))    # == 1 / max(|centroid|, eps)

    # ---- per-row "own centroid" scalars pulled off the lane-dense plane -----
    dots_diag = jnp.sum(dots * g, axis=1, keepdims=True)   # emb . centroid[spk]
    c2_diag = jnp.sum(jnp.where(diag_mask, c2, 0.0),
                      axis=1, keepdims=True)               # |centroid[spk]|^2

    # ---- leave-one-out centroid cosine, derived algebraically ---------------
    dot_same = (n_utt * dots_diag - e2) * inv_m1
    uc2 = (n_utt * n_utt * c2_diag - 2.0 * n_utt * dots_diag + e2) * inv_m1_sq
    cos_same = dot_same * r_e * lax.rsqrt(jnp.maximum(uc2, eps2))  # (NM, 1)

    cos_diff = dots * r_e * r_c                                    # (NM, N_pad)

    # ---- GE2E softmax loss ---------------------------------------------------
    sim_same = w * cos_same + b_eff                                # (NM, 1) == pos
    sim_diff = w * cos_diff + b_eff                                # (NM, N_pad)

    # sum_k exp(sim[:, k]) with the own-speaker column replaced by sim_same and
    # the padded class columns dropped.
    keep = jnp.logical_and(col_valid, jnp.logical_not(diag_mask))
    exp_sum = (jnp.sum(jnp.where(keep, jnp.exp(sim_diff), 0.0),
                       axis=1, keepdims=True)
               + jnp.exp(sim_same))                                # (NM, 1)
    neg = jnp.log(exp_sum + _EPS_SIM)

    loss = jnp.sum(neg - sim_same) * (1.0 / nm)
    out_ref[0, 0] = loss


def ge2e_loss_pallas(embeddings, w, b):
    """embeddings: (N, M, D) float32; w, b: scalar parameters."""
    emb = jnp.asarray(embeddings, jnp.float32)
    N, M, D = emb.shape
    assert M >= 2, "GE2E requires at least 2 utterances per speaker (M - 1 division)"

    NM = N * M
    D_pad = pl.cdiv(D, 128) * 128
    N_pad = pl.cdiv(N, 128) * 128

    # Wrapper-side layout plumbing: flatten (N, M, D) -> (N*M, D) and zero-pad D
    # so the kernel only ever sees lane-dense 2-D tiles.
    emb_flat = emb.reshape(NM, D)
    if D_pad != D:
        emb_flat = jnp.pad(emb_flat, ((0, 0), (0, D_pad - D)))

    w_arr = jnp.asarray(w, jnp.float32).reshape((1,))
    b_arr = jnp.asarray(b, jnp.float32).reshape((1,))

    kernel = functools.partial(_ge2e_kernel, n_spk=N, n_utt=M, n_pad=N_pad)
    out = pl.pallas_call(
        kernel,
        out_shape=jax.ShapeDtypeStruct((1, 1), jnp.float32),
        in_specs=[
            pl.BlockSpec(memory_space=pltpu.MemorySpace.SMEM),   # w
            pl.BlockSpec(memory_space=pltpu.MemorySpace.SMEM),   # b
            pl.BlockSpec(memory_space=pltpu.MemorySpace.VMEM),   # embeddings (full block)
        ],
        out_specs=pl.BlockSpec(memory_space=pltpu.MemorySpace.SMEM),
    )(w_arr, b_arr, emb_flat)
    return out[0, 0]


# ---------------------------- pure-JAX reference -----------------------------
def ge2e_loss_ref(embeddings, w, b):
    emb = embeddings.astype(jnp.float32)
    N, M, D = emb.shape
    sum_per_spk = jnp.sum(emb, axis=1)
    centroids = sum_per_spk / M
    utt_centroids = (sum_per_spk[:, None, :] - emb) / (M - 1)

    def cos(a, b_):
        na = jnp.maximum(jnp.linalg.norm(a, axis=-1), _EPS_COS)
        nb = jnp.maximum(jnp.linalg.norm(b_, axis=-1), _EPS_COS)
        return jnp.sum(a * b_, axis=-1) / (na * nb)

    cos_same = cos(emb, utt_centroids)                                   # (N, M)
    cos_diff = cos(emb[:, :, None, :], centroids[None, None, :, :])      # (N, M, N)
    eye = jnp.eye(N, dtype=bool)[:, None, :]
    cossim = jnp.where(eye, cos_same[:, :, None], cos_diff) + _EPS_SIM
    sim = w * cossim + b
    pos = jnp.sum(jnp.where(eye, sim, 0.0), axis=2)
    neg = jnp.log(jnp.sum(jnp.exp(sim), axis=2) + _EPS_SIM)
    return jnp.sum(-(pos - neg)) / (N * M)


if __name__ == "__main__":
    key = jax.random.PRNGKey(0)
    N, M, D = 4, 8, 32           # speakers, utterances per speaker, embedding dim
    embeddings = jax.random.normal(key, (N, M, D), dtype=jnp.float32)

    # Parameters as in GE2ELoss.__init__ (deterministic, no checkpoint load).
    w = jnp.float32(10.0)
    b = jnp.float32(-5.0)

    loss = jax.block_until_ready(ge2e_loss_pallas(embeddings, w, b))
    ref = jax.block_until_ready(ge2e_loss_ref(embeddings, w, b))
    np.testing.assert_allclose(np.asarray(loss), np.asarray(ref), rtol=1e-4, atol=1e-4)

    print("KERNEL_OK")
</pallas_src>

<mosaic_0001>
module attributes {stable_mosaic.version = 11 : i64} {
  func.func @_ge2e_kernel(%arg0: memref<1xf32, #tpu.memory_space<smem>>, %arg1: memref<1xf32, #tpu.memory_space<smem>>, %arg2: memref<32x128xf32, #tpu.memory_space<vmem>>, %arg3: memref<1x1xf32, #tpu.memory_space<smem>>) attributes {dimension_semantics = [], scalar_prefetch = 0 : i64, scratch_operands = 0 : i64, tpu.core_type = #tpu.core_type<tc>} {
    %c0 = arith.constant 0 : index
    %c0_0 = arith.constant 0 : index
    %0 = vector.load %arg2[%c0, %c0_0] : memref<32x128xf32, #tpu.memory_space<vmem>>, vector<32x128xf32>
    %c0_1 = arith.constant 0 : index
    %1 = memref.load %arg0[%c0_1] : memref<1xf32, #tpu.memory_space<smem>>
    %cst = arith.constant 9.99999997E-7 : f32
    %2 = arith.mulf %1, %cst : f32
    %c0_2 = arith.constant 0 : index
    %3 = memref.load %arg1[%c0_2] : memref<1xf32, #tpu.memory_space<smem>>
    %4 = arith.addf %2, %3 : f32
    %5 = tpu.iota {dimensions = array<i32: 0>} : vector<32x128xi32>
    %6 = tpu.iota {dimensions = array<i32: 1>} : vector<32x128xi32>
    %c8_i32 = arith.constant 8 : i32
    %7 = vector.broadcast %c8_i32 : i32 to vector<32x128xi32>
    %8 = arith.muli %6, %7 : vector<32x128xi32>
    %9 = arith.cmpi sle, %8, %5 : vector<32x128xi32>
    %c8_i32_3 = arith.constant 8 : i32
    %10 = vector.broadcast %c8_i32_3 : i32 to vector<32x128xi32>
    %11 = arith.addi %8, %10 : vector<32x128xi32>
    %12 = arith.cmpi slt, %5, %11 : vector<32x128xi32>
    %13 = arith.andi %9, %12 : vector<32x128xi1>
    %c4_i32 = arith.constant 4 : i32
    %14 = vector.broadcast %c4_i32 : i32 to vector<32x128xi32>
    %15 = arith.cmpi slt, %6, %14 : vector<32x128xi32>
    %16 = arith.extui %13 : vector<32x128xi1> to vector<32x128xi32>
    %17 = arith.sitofp %16 : vector<32x128xi32> to vector<32x128xf32>
    %cst_4 = arith.constant dense<0.000000e+00> : vector<128x128xf32>
    %18 = tpu.matmul %0, %17, %cst_4 {dimension_numbers = #tpu.dot_dimension_numbers<[0], [0], [1], [1], [0, 1, 1, 1], [], []>} : vector<32x128xf32>, vector<32x128xf32>, vector<128x128xf32> -> vector<128x128xf32>
    %cst_5 = arith.constant 1.250000e-01 : f32
    %19 = vector.broadcast %cst_5 : f32 to vector<128x128xf32>
    %20 = arith.mulf %18, %19 : vector<128x128xf32>
    %cst_6 = arith.constant dense<0.000000e+00> : vector<32x128xf32>
    %21 = tpu.matmul %0, %20, %cst_6 {dimension_numbers = #tpu.dot_dimension_numbers<[1], [0], [0], [1], [0, 0, 1, 1], [], []>} : vector<32x128xf32>, vector<128x128xf32>, vector<32x128xf32> -> vector<32x128xf32>
    %22 = arith.mulf %0, %0 : vector<32x128xf32>
    %cst_7 = arith.constant dense<0.000000e+00> : vector<32xf32>
    %23 = vector.multi_reduction <add>, %22, %cst_7 [1] : vector<32x128xf32> to vector<32xf32>
    %24 = vector.shape_cast %23 : vector<32xf32> to vector<32x1xf32>
    %25 = arith.mulf %20, %20 : vector<128x128xf32>
    %cst_8 = arith.constant dense<0.000000e+00> : vector<128xf32>
    %26 = vector.multi_reduction <add>, %25, %cst_8 [0] : vector<128x128xf32> to vector<128xf32>
    %27 = vector.shape_cast %26 : vector<128xf32> to vector<1x128xf32>
    %cst_9 = arith.constant 1.000000e-16 : f32
    %28 = vector.broadcast %cst_9 : f32 to vector<32x1xf32>
    %29 = arith.maximumf %24, %28 : vector<32x1xf32>
    %30 = math.rsqrt %29 : vector<32x1xf32>
    %cst_10 = arith.constant 1.000000e-16 : f32
    %31 = vector.broadcast %cst_10 : f32 to vector<1x128xf32>
    %32 = arith.maximumf %27, %31 : vector<1x128xf32>
    %33 = math.rsqrt %32 : vector<1x128xf32>
    %34 = arith.mulf %21, %17 : vector<32x128xf32>
    %cst_11 = arith.constant dense<0.000000e+00> : vector<32xf32>
    %35 = vector.multi_reduction <add>, %34, %cst_11 [1] : vector<32x128xf32> to vector<32xf32>
    %36 = vector.shape_cast %35 : vector<32xf32> to vector<32x1xf32>
    %cst_12 = arith.constant 0.000000e+00 : f32
    %37 = vector.shape_cast %27 : vector<1x128xf32> to vector<1x128xf32>
    %38 = vector.broadcast %37 : vector<1x128xf32> to vector<32x128xf32>
    %39 = vector.broadcast %cst_12 : f32 to vector<32x128xf32>
    %40 = arith.select %13, %38, %39 : vector<32x128xi1>, vector<32x128xf32>
    %cst_13 = arith.constant dense<0.000000e+00> : vector<32xf32>
    %41 = vector.multi_reduction <add>, %40, %cst_13 [1] : vector<32x128xf32> to vector<32xf32>
    %42 = vector.shape_cast %41 : vector<32xf32> to vector<32x1xf32>
    %cst_14 = arith.constant 8.000000e+00 : f32
    %43 = vector.broadcast %cst_14 : f32 to vector<32x1xf32>
    %44 = arith.mulf %43, %36 : vector<32x1xf32>
    %45 = arith.subf %44, %24 : vector<32x1xf32>
    %cst_15 = arith.constant 0.142857149 : f32
    %46 = vector.broadcast %cst_15 : f32 to vector<32x1xf32>
    %47 = arith.mulf %45, %46 : vector<32x1xf32>
    %cst_16 = arith.constant 6.400000e+01 : f32
    %48 = vector.broadcast %cst_16 : f32 to vector<32x1xf32>
    %49 = arith.mulf %48, %42 : vector<32x1xf32>
    %cst_17 = arith.constant 1.600000e+01 : f32
    %50 = vector.broadcast %cst_17 : f32 to vector<32x1xf32>
    %51 = arith.mulf %50, %36 : vector<32x1xf32>
    %52 = arith.subf %49, %51 : vector<32x1xf32>
    %53 = arith.addf %52, %24 : vector<32x1xf32>
    %cst_18 = arith.constant 0.0204081628 : f32
    %54 = vector.broadcast %cst_18 : f32 to vector<32x1xf32>
    %55 = arith.mulf %53, %54 : vector<32x1xf32>
    %56 = arith.mulf %47, %30 : vector<32x1xf32>
    %cst_19 = arith.constant 1.000000e-16 : f32
    %57 = vector.broadcast %cst_19 : f32 to vector<32x1xf32>
    %58 = arith.maximumf %55, %57 : vector<32x1xf32>
    %59 = math.rsqrt %58 : vector<32x1xf32>
    %60 = arith.mulf %56, %59 : vector<32x1xf32>
    %61 = vector.broadcast %30 : vector<32x1xf32> to vector<32x128xf32>
    %62 = arith.mulf %21, %61 : vector<32x128xf32>
    %63 = vector.broadcast %33 : vector<1x128xf32> to vector<32x128xf32>
    %64 = arith.mulf %62, %63 : vector<32x128xf32>
    %65 = vector.broadcast %1 : f32 to vector<32x1xf32>
    %66 = arith.mulf %65, %60 : vector<32x1xf32>
    %67 = vector.broadcast %4 : f32 to vector<32x1xf32>
    %68 = arith.addf %66, %67 : vector<32x1xf32>
    %69 = vector.broadcast %1 : f32 to vector<32x128xf32>
    %70 = arith.mulf %69, %64 : vector<32x128xf32>
    %71 = vector.broadcast %4 : f32 to vector<32x128xf32>
    %72 = arith.addf %70, %71 : vector<32x128xf32>
    %cst_20 = arith.constant dense<true> : vector<32x128xi1>
    %73 = arith.xori %13, %cst_20 : vector<32x128xi1>
    %74 = arith.andi %15, %73 : vector<32x128xi1>
    %75 = math.exp %72 : vector<32x128xf32>
    %cst_21 = arith.constant 0.000000e+00 : f32
    %76 = vector.broadcast %cst_21 : f32 to vector<32x128xf32>
    %77 = arith.select %74, %75, %76 : vector<32x128xi1>, vector<32x128xf32>
    %cst_22 = arith.constant dense<0.000000e+00> : vector<32xf32>
    %78 = vector.multi_reduction <add>, %77, %cst_22 [1] : vector<32x128xf32> to vector<32xf32>
    %79 = vector.shape_cast %78 : vector<32xf32> to vector<32x1xf32>
    %80 = math.exp %68 : vector<32x1xf32>
    %81 = arith.addf %79, %80 : vector<32x1xf32>
    %cst_23 = arith.constant 9.99999997E-7 : f32
    %82 = vector.broadcast %cst_23 : f32 to vector<32x1xf32>
    %83 = arith.addf %81, %82 : vector<32x1xf32>
    %84 = math.log %83 : vector<32x1xf32>
    %85 = arith.subf %84, %68 : vector<32x1xf32>
    %86 = vector.shape_cast %85 : vector<32x1xf32> to vector<1x32x1xf32>
    %cst_24 = arith.constant dense<0.000000e+00> : vector<1xf32>
    %87 = vector.multi_reduction <add>, %86, %cst_24 [1, 2] : vector<1x32x1xf32> to vector<1xf32>
    %88 = vector.shape_cast %87 : vector<1xf32> to vector<1x1x1xf32>
    %89 = vector.extract %88[0, 0, 0] : f32 from vector<1x1x1xf32>
    %cst_25 = arith.constant 3.125000e-02 : f32
    %90 = arith.mulf %89, %cst_25 : f32
    %c0_26 = arith.constant 0 : index
    %c0_27 = arith.constant 0 : index
    %91 = memref.load %arg3[%c0_26, %c0_27] : memref<1x1xf32, #tpu.memory_space<smem>>
    memref.store %90, %arg3[%c0_26, %c0_27] : memref<1x1xf32, #tpu.memory_space<smem>>
    return
  }
}

</mosaic_0001>

<llo_original>
// kernel: tpu_custom_call.1
$region0: #{tpu_custom_call.1}
  #allocation0 [shape = 'u32[]', space=smem, size = 0x4, offset = 0x4, fixed_abs, tag = 'smem constant byte address 0x4 - core index']
  #allocation1 [shape = 'u32[144,128]{1,0:T(1,128)}', space=vmem, size = 0x12000, scoped, tag = 'internal scratch']
  #allocation2 [shape = 'f32[1]{0:T(128)S(6)}', space=smem, size = 0x200, scoped, tag = 'scoped memory for tpu_custom_call.1']
  #allocation3 [shape = 'f32[1]{0:T(128)S(6)}', space=smem, size = 0x200, scoped, tag = 'scoped memory for tpu_custom_call.1']
  %s0 = inlined_call_operand.<no memory space> [shape: f32[1], index: 0, kind: input, shape index: {}]
  %s1 = inlined_call_operand.<no memory space> [shape: f32[1], index: 1, kind: input, shape index: {}]
  %s2 = inlined_call_operand.hbm [shape: f32[32,128], index: 2, kind: input, shape index: {}]
  %s3 = inlined_call_operand.hbm [shape: f32[1,1], index: 3, kind: output, shape index: {}]
  %s4 = sld [smem:[#allocation0]]
  $region26: #{tpu_custom_call.1} parent=0
    _
  %s6 = ssub.s32 1, %s4
  %s7 = scalar_select 0, %s6, %s4
  %8 = sst [smem:[#allocation2]] %s0
  %9 = sst [smem:[#allocation3]] %s1
  $region1: #{tpu_custom_call.1} parent=0
    #allocation4 [shape = 'u8[16384]{0}', space=vmem, size = 0x4000, scoped, tag = 'input window, operand 2, single buffered']
    #allocation5 [shape = 's32[1]{0}', space=sflag, size = 0x4, scoped, tag = 'scoped memory for tpu_custom_call.1']
    #allocation6 [shape = 's32[1]{0}', space=sflag, size = 0x4, scoped, tag = 'scoped memory for tpu_custom_call.1']
    #allocation7 [shape = 'u8[512]{0}', space=smem, size = 0x200, scoped, tag = 'output window, operand 0, single buffered']
    %10 = vsyncpa [#allocation5], 0
    %11 = vsyncpa [#allocation6], 0
    // Predicated region
    $region2: #{tpu_custom_call.1} parent=1 // pred_check
      _
    $region3: #{tpu_custom_call.1} parent=1 // pred_check_branch
      %13 = sbr.rel (0) target = $region5
    $region4: #{tpu_custom_call.1} parent=1 // pred_region
      _
    $region5: #{tpu_custom_call.1} parent=1 // pred_fallthru
      _
    // Predicated region
    $region6: #{tpu_custom_call.1} parent=1 // pred_check
      _
    $region7: #{tpu_custom_call.1} parent=1 // pred_check_branch
      %15 = sbr.rel (0) target = $region9
    $region8: #{tpu_custom_call.1} parent=1 // pred_region
      _
    $region9: #{tpu_custom_call.1} parent=1 // pred_fallthru
      _
    // Predicated region
    $region10: #{tpu_custom_call.1} parent=1 // pred_check
      _
    $region11: #{tpu_custom_call.1} parent=1 // pred_check_branch
      %17 = sbr.rel (0) target = $region13
    $region12: #{tpu_custom_call.1} parent=1 // pred_region
      %s19 = ssub.s32 512, 512
      %20 = vsyncadd [#allocation5], %s19
      %s21 = sshll.u32 [#allocation4], 4
      %s22 = int_to_ptr.vmem [resolvable:$true] %s21
      %27 = dma.hbm_to_vmem [thread:$0]  %s2, 512, %s22, [#allocation5], 128, 128, 8
    $region13: #{tpu_custom_call.1} parent=1 // pred_fallthru
      _
    // Predicated region
    $region14: #{tpu_custom_call.1} parent=1 // pred_check
      _
    $region15: #{tpu_custom_call.1} parent=1 // pred_check_branch
      %29 = sbr.rel (0) target = $region17
    $region16: #{tpu_custom_call.1} parent=1 // pred_region
      %30 = dma.done [#allocation5], 512
    $region17: #{tpu_custom_call.1} parent=1 // pred_fallthru
      _
    %v31 = vld [vmem:[#allocation4] sm:$0xff]
    %v32 = vld [vmem:[#allocation4 + $0x8] sm:$0xff]
    %v33 = vld [vmem:[#allocation4 + $0x10] sm:$0xff]
    %v34 = vld [vmem:[#allocation4 + $0x18] sm:$0xff]
    %s35 = sld [smem:[#allocation2]]
    %s36 = smul.f32 %s35, 1e-06
    %s37 = sld [smem:[#allocation3]]
    %s38 = sadd.f32 %s36, %s37
    %v39 = vlaneseq
    %v40 = vshrl.u32 %v39, 7
    %v41 = vadd.s32 %v40, 8
    %v42 = vadd.s32 %v40, 16
    %v43 = vadd.s32 %v40, 24
    %v44 = vlaneseq
    %v45 = vand.u32 %v44, 127
    %v46 = vmul.u32 %v45, 8
    %vm47 = vcmp.le.s32.totalorder %v46, %v40
    %vm48 = vcmp.le.s32.totalorder %v46, %v41
    %vm49 = vcmp.le.s32.totalorder %v46, %v42
    %vm50 = vcmp.le.s32.totalorder %v46, %v43
    %v51 = vadd.s32 %v46, 8
    %vm52 = vcmp.lt.s32.totalorder %v40, %v51
    %vm53 = vcmp.lt.s32.totalorder %v41, %v51
    %vm54 = vcmp.lt.s32.totalorder %v42, %v51
    %vm55 = vcmp.lt.s32.totalorder %v43, %v51
    %vm56 = vmand %vm47, %vm52
    %vm57 = vmand %vm48, %vm53
    %vm58 = vmand %vm49, %vm54
    %vm59 = vmand %vm50, %vm55
    %vm60 = vcmp.lt.s32.totalorder %v45, 4
    %v61 = vsel %vm56, 1, 0
    %v62 = vsel %vm57, 1, 0
    %v63 = vsel %vm58, 1, 0
    %v64 = vsel %vm59, 1, 0
    %v65 = vcvt.s32.f32 %v61
    %v66 = vcvt.s32.f32 %v62
    %v67 = vcvt.s32.f32 %v63
    %v68 = vcvt.s32.f32 %v64
    %69 = vxpose.xlu0.b32.start [1/16] %v31, 128
    %70 = vxpose.xlu0.b32.cont [2/16] %v32, 128
    %71 = vxpose.xlu0.b32.cont [3/16] %v33, 128
    %72 = vxpose.xlu0.b32.cont [4/16] %v34, 128
    %73 = vxpose.xlu0.b32.cont [5/16] 0.0, 128
    %74 = vxpose.xlu0.b32.cont [6/16] 0.0, 128
    %75 = vxpose.xlu0.b32.cont [7/16] 0.0, 128
    %76 = vxpose.xlu0.b32.cont [8/16] 0.0, 128
    %77 = vxpose.xlu0.b32.cont [9/16] 0.0, 128
    %78 = vxpose.xlu0.b32.cont [10/16] 0.0, 128
    %79 = vxpose.xlu0.b32.cont [11/16] 0.0, 128
    %80 = vxpose.xlu0.b32.cont [12/16] 0.0, 128
    %81 = vxpose.xlu0.b32.cont [13/16] 0.0, 128
    %82 = vxpose.xlu0.b32.cont [14/16] 0.0, 128
    %83 = vxpose.xlu0.b32.cont [15/16] 0.0, 128
    %84 = vxpose.xlu0.b32.end [16/16] 0.0, 128
    %v85 = vpop.trf.xlu0
    %v86 = vpop.trf.xlu0
    %v87 = vpop.trf.xlu0
    %v88 = vpop.trf.xlu0
    %v89 = vpop.trf.xlu0
    %v90 = vpop.trf.xlu0
    %v91 = vpop.trf.xlu0
    %v92 = vpop.trf.xlu0
    %v93 = vpop.trf.xlu0
    %v94 = vpop.trf.xlu0
    %v95 = vpop.trf.xlu0
    %v96 = vpop.trf.xlu0
    %v97 = vpop.trf.xlu0
    %v98 = vpop.trf.xlu0
    %v99 = vpop.trf.xlu0
    %v100 = vpop.trf.xlu0
    %vm101 = vcmask 261120
    %v103 = vsel %vm101, %v85, 0
    %v106 = vsel %vm101, %v86, 0
    %v109 = vsel %vm101, %v87, 0
    %v112 = vsel %vm101, %v88, 0
    %v115 = vsel %vm101, %v89, 0
    %v118 = vsel %vm101, %v90, 0
    %v121 = vsel %vm101, %v91, 0
    %v124 = vsel %vm101, %v92, 0
    %v127 = vsel %vm101, %v93, 0
    %v130 = vsel %vm101, %v94, 0
    %v133 = vsel %vm101, %v95, 0
    %v136 = vsel %vm101, %v96, 0
    %v139 = vsel %vm101, %v97, 0
    %v142 = vsel %vm101, %v98, 0
    %v145 = vsel %vm101, %v99, 0
    %v148 = vsel %vm101, %v100, 0
    %150 = vmatprep.subr.mxu0 0.0
    %151 = vmatpush1.msra.mxu0 %v65
    %152 = vmatprep.subr.mxu0 0.0
    %153 = vmatpush1.msra.mxu0 %v66
    %154 = vmatprep.subr.mxu0 0.0
    %155 = vmatpush1.msra.mxu0 %v67
    %156 = vmatprep.subr.mxu0 0.0
    %157 = vmatpush1.msra.mxu0 %v68
    %158 = vmatprep.subr.mxu0 0.0
    %159 = vmatpush1.msra.mxu0 0.0
    %160 = vmatprep.subr.mxu0 0.0
    %161 = vmatpush1.msra.mxu0 0.0
    %162 = vmatprep.subr.mxu0 0.0
    %163 = vmatpush1.msra.mxu0 0.0
    %164 = vmatprep.subr.mxu0 0.0
    %165 = vmatpush1.msra.mxu0 0.0
    %166 = vmatprep.subr.mxu0 0.0
    %167 = vmatpush1.msra.mxu0 0.0
    %168 = vmatprep.subr.mxu0 0.0
    %169 = vmatpush1.msra.mxu0 0.0
    %170 = vmatprep.subr.mxu0 0.0
    %171 = vmatpush1.msra.mxu0 0.0
    %172 = vmatprep.subr.mxu0 0.0
    %173 = vmatpush1.msra.mxu0 0.0
    %174 = vmatprep.subr.mxu0 0.0
    %175 = vmatpush1.msra.mxu0 0.0
    %176 = vmatprep.subr.mxu0 0.0
    %177 = vmatpush1.msra.mxu0 0.0
    %178 = vmatprep.subr.mxu0 0.0
    %179 = vmatpush1.msra.mxu0 0.0
    %180 = vmatprep.subr.mxu0 0.0
    %181 = vmatpush1.msra.mxu0 0.0
    %182 = vmatprep.subr.mxu0 0.0
    %183 = vmatpush1.msra.mxu0 0.0
    %184 = vmatprep.subr.mxu0 0.0
    %185 = vmatpush1.msra.mxu0 0.0
    %186 = vmatprep.subr.mxu0 0.0
    %187 = vmatpush1.msra.mxu0 0.0
    %188 = vmatprep.subr.mxu0 0.0
    %189 = vmatpush1.msra.mxu0 0.0
    %190 = vmatprep.subr.mxu0 0.0
    %191 = vmatpush1.msra.mxu0 0.0
    %192 = vmatprep.subr.mxu0 0.0
    %193 = vmatpush1.msra.mxu0 0.0
    %194 = vmatprep.subr.mxu0 0.0
    %195 = vmatpush1.msra.mxu0 0.0
    %196 = vmatprep.subr.mxu0 0.0
    %197 = vmatpush1.msra.mxu0 0.0
    %198 = vmatprep.subr.mxu0 0.0
    %199 = vmatpush1.msra.mxu0 0.0
    %200 = vmatprep.subr.mxu0 0.0
    %201 = vmatpush1.msra.mxu0 0.0
    %202 = vmatprep.subr.mxu0 0.0
    %203 = vmatpush1.msra.mxu0 0.0
    %204 = vmatprep.subr.mxu0 0.0
    %205 = vmatpush1.msra.mxu0 0.0
    %206 = vmatprep.subr.mxu0 0.0
    %207 = vmatpush1.msra.mxu0 0.0
    %208 = vmatprep.subr.mxu0 0.0
    %209 = vmatpush1.msra.mxu0 0.0
    %210 = vmatprep.subr.mxu0 0.0
    %211 = vmatpush1.msra.mxu0 0.0
    %212 = vmatprep.subr.mxu0 0.0
    %213 = vmatpush1.msra.mxu0 0.0
    %214 = vmatprep.mubr.f32.mxu0 0.0
    %215 = vmatmul.mubr.f32.gmra.mrb[0].mxu0 %v103
    %v216 = vpop.f32.mrb[0].mxu0
    %v217 = vadd.f32 0.0, %v216
    %v218 = vpop.f32.mrb[0].mxu0
    %219 = vmatprep.mubr.f32.mxu0 0.0
    %220 = vmatmul.mubr.f32.gmra.mrb[0].mxu0 %v106
    %v221 = vpop.f32.mrb[0].mxu0
    %v222 = vadd.f32 0.0, %v221
    %v223 = vpop.f32.mrb[0].mxu0
    %224 = vmatprep.mubr.f32.mxu0 0.0
    %225 = vmatmul.mubr.f32.gmra.mrb[0].mxu0 %v109
    %v226 = vpop.f32.mrb[0].mxu0
    %v227 = vadd.f32 0.0, %v226
    %v228 = vpop.f32.mrb[0].mxu0
    %229 = vmatprep.mubr.f32.mxu0 0.0
    %230 = vmatmul.mubr.f32.gmra.mrb[0].mxu0 %v112
    %v231 = vpop.f32.mrb[0].mxu0
    %v232 = vadd.f32 0.0, %v231
    %v233 = vpop.f32.mrb[0].mxu0
    %234 = vmatprep.mubr.f32.mxu0 0.0
    %235 = vmatmul.mubr.f32.gmra.mrb[0].mxu0 %v115
    %v236 = vpop.f32.mrb[0].mxu0
    %v237 = vadd.f32 0.0, %v236
    %v238 = vpop.f32.mrb[0].mxu0
    %239 = vmatprep.mubr.f32.mxu0 0.0
    %240 = vmatmul.mubr.f32.gmra.mrb[0].mxu0 %v118
    %v241 = vpop.f32.mrb[0].mxu0
    %v242 = vadd.f32 0.0, %v241
    %v243 = vpop.f32.mrb[0].mxu0
    %244 = vmatprep.mubr.f32.mxu0 0.0
    %245 = vmatmul.mubr.f32.gmra.mrb[0].mxu0 %v121
    %v246 = vpop.f32.mrb[0].mxu0
    %v247 = vadd.f32 0.0, %v246
    %v248 = vpop.f32.mrb[0].mxu0
    %249 = vmatprep.mubr.f32.mxu0 0.0
    %250 = vmatmul.mubr.f32.gmra.mrb[0].mxu0 %v124
    %v251 = vpop.f32.mrb[0].mxu0
    %v252 = vadd.f32 0.0, %v251
    %v253 = vpop.f32.mrb[0].mxu0
    %254 = vmatprep.mubr.f32.mxu0 0.0
    %255 = vmatmul.mubr.f32.gmra.mrb[0].mxu0 %v127
    %v256 = vpop.f32.mrb[0].mxu0
    %v257 = vadd.f32 0.0, %v256
    %v258 = vpop.f32.mrb[0].mxu0
    %259 = vmatprep.mubr.f32.mxu0 0.0
    %260 = vmatmul.mubr.f32.gmra.mrb[0].mxu0 %v130
    %v261 = vpop.f32.mrb[0].mxu0
    %v262 = vadd.f32 0.0, %v261
    %v263 = vpop.f32.mrb[0].mxu0
    %264 = vmatprep.mubr.f32.mxu0 0.0
    %265 = vmatmul.mubr.f32.gmra.mrb[0].mxu0 %v133
    %v266 = vpop.f32.mrb[0].mxu0
    %v267 = vadd.f32 0.0, %v266
    %v268 = vpop.f32.mrb[0].mxu0
    %269 = vmatprep.mubr.f32.mxu0 0.0
    %270 = vmatmul.mubr.f32.gmra.mrb[0].mxu0 %v136
    %v271 = vpop.f32.mrb[0].mxu0
    %v272 = vadd.f32 0.0, %v271
    %v273 = vpop.f32.mrb[0].mxu0
    %274 = vmatprep.mubr.f32.mxu0 0.0
    %275 = vmatmul.mubr.f32.gmra.mrb[0].mxu0 %v139
    %v276 = vpop.f32.mrb[0].mxu0
    %v277 = vadd.f32 0.0, %v276
    %v278 = vpop.f32.mrb[0].mxu0
    %279 = vmatprep.mubr.f32.mxu0 0.0
    %280 = vmatmul.mubr.f32.gmra.mrb[0].mxu0 %v142
    %v281 = vpop.f32.mrb[0].mxu0
    %v282 = vadd.f32 0.0, %v281
    %v283 = vpop.f32.mrb[0].mxu0
    %284 = vmatprep.mubr.f32.mxu0 0.0
    %285 = vmatmul.mubr.f32.gmra.mrb[0].mxu0 %v145
    %v286 = vpop.f32.mrb[0].mxu0
    %v287 = vadd.f32 0.0, %v286
    %v288 = vpop.f32.mrb[0].mxu0
    %289 = vmatprep.mubr.f32.mxu0 0.0
    %290 = vmatmul.mubr.f32.gmra.mrb[0].mxu0 %v148
    %v291 = vpop.f32.mrb[0].mxu0
    %v292 = vadd.f32 0.0, %v291
    %v293 = vpop.f32.mrb[0].mxu0
    %294 = vdwg.mxu0
    %v295 = vmul.f32 %v217, 0.125
    %v296 = vmul.f32 %v222, 0.125
    %v297 = vmul.f32 %v227, 0.125
    %v298 = vmul.f32 %v232, 0.125
    %v299 = vmul.f32 %v237, 0.125
    %v300 = vmul.f32 %v242, 0.125
    %v301 = vmul.f32 %v247, 0.125
    %v302 = vmul.f32 %v252, 0.125
    %v303 = vmul.f32 %v257, 0.125
    %v304 = vmul.f32 %v262, 0.125
    %v305 = vmul.f32 %v267, 0.125
    %v306 = vmul.f32 %v272, 0.125
    %v307 = vmul.f32 %v277, 0.125
    %v308 = vmul.f32 %v282, 0.125
    %v309 = vmul.f32 %v287, 0.125
    %v310 = vmul.f32 %v292, 0.125
    %311 = vmatprep.subr.mxu0 0.0
    %312 = vmatpush1.msra.mxu0 %v295
    %313 = vmatprep.subr.mxu0 0.0
    %314 = vmatpush1.msra.mxu0 %v296
    %315 = vmatprep.subr.mxu0 0.0
    %316 = vmatpush1.msra.mxu0 %v297
    %317 = vmatprep.subr.mxu0 0.0
    %318 = vmatpush1.msra.mxu0 %v298
    %319 = vmatprep.subr.mxu0 0.0
    %320 = vmatpush1.msra.mxu0 %v299
    %321 = vmatprep.subr.mxu0 0.0
    %322 = vmatpush1.msra.mxu0 %v300
    %323 = vmatprep.subr.mxu0 0.0
    %324 = vmatpush1.msra.mxu0 %v301
    %325 = vmatprep.subr.mxu0 0.0
    %326 = vmatpush1.msra.mxu0 %v302
    %327 = vmatprep.subr.mxu0 0.0
    %328 = vmatpush1.msra.mxu0 %v303
    %329 = vmatprep.subr.mxu0 0.0
    %330 = vmatpush1.msra.mxu0 %v304
    %331 = vmatprep.subr.mxu0 0.0
    %332 = vmatpush1.msra.mxu0 %v305
    %333 = vmatprep.subr.mxu0 0.0
    %334 = vmatpush1.msra.mxu0 %v306
    %335 = vmatprep.subr.mxu0 0.0
    %336 = vmatpush1.msra.mxu0 %v307
    %337 = vmatprep.subr.mxu0 0.0
    %338 = vmatpush1.msra.mxu0 %v308
    %339 = vmatprep.subr.mxu0 0.0
    %340 = vmatpush1.msra.mxu0 %v309
    %341 = vmatprep.subr.mxu0 0.0
    %342 = vmatpush1.msra.mxu0 %v310
    %343 = vmatprep.subr.mxu0 0.0
    %344 = vmatpush1.msra.mxu0 0.0
    %345 = vmatprep.subr.mxu0 0.0
    %346 = vmatpush1.msra.mxu0 0.0
    %347 = vmatprep.subr.mxu0 0.0
    %348 = vmatpush1.msra.mxu0 0.0
    %349 = vmatprep.subr.mxu0 0.0
    %350 = vmatpush1.msra.mxu0 0.0
    %351 = vmatprep.subr.mxu0 0.0
    %352 = vmatpush1.msra.mxu0 0.0
    %353 = vmatprep.subr.mxu0 0.0
    %354 = vmatpush1.msra.mxu0 0.0
    %355 = vmatprep.subr.mxu0 0.0
    %356 = vmatpush1.msra.mxu0 0.0
    %357 = vmatprep.subr.mxu0 0.0
    %358 = vmatpush1.msra.mxu0 0.0
    %359 = vmatprep.subr.mxu0 0.0
    %360 = vmatpush1.msra.mxu0 0.0
    %361 = vmatprep.subr.mxu0 0.0
    %362 = vmatpush1.msra.mxu0 0.0
    %363 = vmatprep.subr.mxu0 0.0
    %364 = vmatpush1.msra.mxu0 0.0
    %365 = vmatprep.subr.mxu0 0.0
    %366 = vmatpush1.msra.mxu0 0.0
    %367 = vmatprep.subr.mxu0 0.0
    %368 = vmatpush1.msra.mxu0 0.0
    %369 = vmatprep.subr.mxu0 0.0
    %370 = vmatpush1.msra.mxu0 0.0
    %371 = vmatprep.subr.mxu0 0.0
    %372 = vmatpush1.msra.mxu0 0.0
    %373 = vmatprep.subr.mxu0 0.0
    %374 = vmatpush1.msra.mxu0 0.0
    %375 = vmatprep.mubr.f32.mxu0 0.0
    %376 = vmatmul.mubr.f32.gmra.mrb[0].mxu0 %v31
    %v377 = vpop.f32.mrb[0].mxu0
    %v378 = vadd.f32 0.0, %v377
    %v379 = vpop.f32.mrb[0].mxu0
    %380 = vmatprep.mubr.f32.mxu0 0.0
    %381 = vmatmul.mubr.f32.gmra.mrb[0].mxu0 %v32
    %v382 = vpop.f32.mrb[0].mxu0
    %v383 = vadd.f32 0.0, %v382
    %v384 = vpop.f32.mrb[0].mxu0
    %385 = vmatprep.mubr.f32.mxu0 0.0
    %386 = vmatmul.mubr.f32.gmra.mrb[0].mxu0 %v33
    %v387 = vpop.f32.mrb[0].mxu0
    %v388 = vadd.f32 0.0, %v387
    %v389 = vpop.f32.mrb[0].mxu0
    %390 = vmatprep.mubr.f32.mxu0 0.0
    %391 = vmatmul.mubr.f32.gmra.mrb[0].mxu0 %v34
    %v392 = vpop.f32.mrb[0].mxu0
    %v393 = vadd.f32 0.0, %v392
    %v394 = vpop.f32.mrb[0].mxu0
    %395 = vdwg.mxu0
    %v396 = vmul.f32 %v31, %v31
    %v397 = vmul.f32 %v32, %v32
    %v398 = vmul.f32 %v33, %v33
    %v399 = vmul.f32 %v34, %v34
    %400 = vadd.xlane.f32.xlu0 %v396
    %v401 = vpop.xlane.xlu0 %400
    %402 = vadd.xlane.f32.xlu0 %v397
    %v403 = vpop.xlane.xlu0 %402
    %404 = vadd.xlane.f32.xlu0 %v398
    %v405 = vpop.xlane.xlu0 %404
    %406 = vadd.xlane.f32.xlu0 %v399
    %v407 = vpop.xlane.xlu0 %406
    %v408 = vmul.f32 %v295, %v295
    %v409 = vmul.f32 %v296, %v296
    %v410 = vmul.f32 %v297, %v297
    %v411 = vmul.f32 %v298, %v298
    %v412 = vmul.f32 %v299, %v299
    %v413 = vmul.f32 %v300, %v300
    %v414 = vmul.f32 %v301, %v301
    %v415 = vmul.f32 %v302, %v302
    %v416 = vmul.f32 %v303, %v303
    %v417 = vmul.f32 %v304, %v304
    %v418 = vmul.f32 %v305, %v305
    %v419 = vmul.f32 %v306, %v306
    %v420 = vmul.f32 %v307, %v307
    %v421 = vmul.f32 %v308, %v308
    %v422 = vmul.f32 %v309, %v309
    %v423 = vmul.f32 %v310, %v310
    %v424 = vadd.f32 %v408, %v409
    %v425 = vadd.f32 %v424, %v410
    %v426 = vadd.f32 %v425, %v411
    %v427 = vadd.f32 %v426, %v412
    %v428 = vadd.f32 %v427, %v413
    %v429 = vadd.f32 %v428, %v414
    %v430 = vadd.f32 %v429, %v415
    %v431 = vadd.f32 %v430, %v416
    %v432 = vadd.f32 %v431, %v417
    %v433 = vadd.f32 %v432, %v418
    %v434 = vadd.f32 %v433, %v419
    %v435 = vadd.f32 %v434, %v420
    %v436 = vadd.f32 %v435, %v421
    %v437 = vadd.f32 %v436, %v422
    %v438 = vadd.f32 %v437, %v423
    %v439 = vrot.slane %v438, 4
    %v440 = vadd.f32 %v438, %v439
    %v441 = vrot.slane %v440, 2
    %v442 = vadd.f32 %v440, %v441
    %v443 = vrot.slane %v442, 1
    %v444 = vadd.f32 %v442, %v443
    %v445 = vmax.f32 %v401, 1e-16
    %v446 = vmax.f32 %v403, 1e-16
    %v447 = vmax.f32 %v405, 1e-16
    %v448 = vmax.f32 %v407, 1e-16
    %v449 = vrsqrt.pop %v445
    %v450 = vrsqrt.pop %v446
    %v451 = vrsqrt.pop %v447
    %v452 = vrsqrt.pop %v448
    %v453 = vmax.f32 %v444, 1e-16
    %v454 = vrsqrt.pop %v453
    %v455 = vmul.f32 %v378, %v65
    %v456 = vmul.f32 %v383, %v66
    %v457 = vmul.f32 %v388, %v67
    %v458 = vmul.f32 %v393, %v68
    %459 = vadd.xlane.f32.xlu0 %v455
    %v460 = vpop.xlane.xlu0 %459
    %461 = vadd.xlane.f32.xlu0 %v456
    %v462 = vpop.xlane.xlu0 %461
    %463 = vadd.xlane.f32.xlu0 %v457
    %v464 = vpop.xlane.xlu0 %463
    %465 = vadd.xlane.f32.xlu0 %v458
    %v466 = vpop.xlane.xlu0 %465
    %v467 = vsel %vm56, %v444, 0.0
    %v468 = vsel %vm57, %v444, 0.0
    %v469 = vsel %vm58, %v444, 0.0
    %v470 = vsel %vm59, %v444, 0.0
    %471 = vadd.xlane.f32.xlu0 %v467
    %v472 = vpop.xlane.xlu0 %471
    %473 = vadd.xlane.f32.xlu0 %v468
    %v474 = vpop.xlane.xlu0 %473
    %475 = vadd.xlane.f32.xlu0 %v469
    %v476 = vpop.xlane.xlu0 %475
    %477 = vadd.xlane.f32.xlu0 %v470
    %v478 = vpop.xlane.xlu0 %477
    %v479 = vmul.f32 %v460, 8.0
    %v480 = vmul.f32 %v462, 8.0
    %v481 = vmul.f32 %v464, 8.0
    %v482 = vmul.f32 %v466, 8.0
    %v483 = vsub.f32 %v479, %v401
    %v484 = vsub.f32 %v480, %v403
    %v485 = vsub.f32 %v481, %v405
    %v486 = vsub.f32 %v482, %v407
    %v487 = vmul.f32 %v483, 0.14285715
    %v488 = vmul.f32 %v484, 0.14285715
    %v489 = vmul.f32 %v485, 0.14285715
    %v490 = vmul.f32 %v486, 0.14285715
    %v491 = vmul.f32 %v472, 64.0
    %v492 = vmul.f32 %v474, 64.0
    %v493 = vmul.f32 %v476, 64.0
    %v494 = vmul.f32 %v478, 64.0
    %v495 = vmul.f32 %v460, 16.0
    %v496 = vmul.f32 %v462, 16.0
    %v497 = vmul.f32 %v464, 16.0
    %v498 = vmul.f32 %v466, 16.0
    %v499 = vsub.f32 %v491, %v495
    %v500 = vsub.f32 %v492, %v496
    %v501 = vsub.f32 %v493, %v497
    %v502 = vsub.f32 %v494, %v498
    %v503 = vadd.f32 %v499, %v401
    %v504 = vadd.f32 %v500, %v403
    %v505 = vadd.f32 %v501, %v405
    %v506 = vadd.f32 %v502, %v407
    %v507 = vmul.f32 %v503, 0.020408163
    %v508 = vmul.f32 %v504, 0.020408163
    %v509 = vmul.f32 %v505, 0.020408163
    %v510 = vmul.f32 %v506, 0.020408163
    %v511 = vmul.f32 %v487, %v449
    %v512 = vmul.f32 %v488, %v450
    %v513 = vmul.f32 %v489, %v451
    %v514 = vmul.f32 %v490, %v452
    %v515 = vmax.f32 %v507, 1e-16
    %v516 = vmax.f32 %v508, 1e-16
    %v517 = vmax.f32 %v509, 1e-16
    %v518 = vmax.f32 %v510, 1e-16
    %v519 = vrsqrt.pop %v515
    %v520 = vrsqrt.pop %v516
    %v521 = vrsqrt.pop %v517
    %v522 = vrsqrt.pop %v518
    %v523 = vmul.f32 %v511, %v519
    %v524 = vmul.f32 %v512, %v520
    %v525 = vmul.f32 %v513, %v521
    %v526 = vmul.f32 %v514, %v522
    %v527 = vmul.f32 %v378, %v449
    %v528 = vmul.f32 %v383, %v450
    %v529 = vmul.f32 %v388, %v451
    %v530 = vmul.f32 %v393, %v452
    %v531 = vmul.f32 %v527, %v454
    %v532 = vmul.f32 %v528, %v454
    %v533 = vmul.f32 %v529, %v454
    %v534 = vmul.f32 %v530, %v454
    %v535 = vstv %s35
    %v536 = vmul.f32 %v535, %v523
    %v537 = vmul.f32 %v535, %v524
    %v538 = vmul.f32 %v535, %v525
    %v539 = vmul.f32 %v535, %v526
    %v540 = vstv %s38
    %v541 = vadd.f32 %v536, %v540
    %v542 = vadd.f32 %v537, %v540
    %v543 = vadd.f32 %v538, %v540
    %v544 = vadd.f32 %v539, %v540
    %v545 = vmul.f32 %v535, %v531
    %v546 = vmul.f32 %v535, %v532
    %v547 = vmul.f32 %v535, %v533
    %v548 = vmul.f32 %v535, %v534
    %v549 = vadd.f32 %v545, %v540
    %v550 = vadd.f32 %v546, %v540
    %v551 = vadd.f32 %v547, %v540
    %v552 = vadd.f32 %v548, %v540
    %vm553 = vmxor %vm56, 1
    %vm554 = vmxor %vm57, 1
    %vm555 = vmxor %vm58, 1
    %vm556 = vmxor %vm59, 1
    %vm557 = vmand %vm60, %vm553
    %vm558 = vmand %vm60, %vm554
    %vm559 = vmand %vm60, %vm555
    %vm560 = vmand %vm60, %vm556
    %v561 = vmul.f32 %v549, 1.442695
    %v562 = vpow.pop %v561
    %v563 = vmul.f32 %v550, 1.442695
    %v564 = vpow.pop %v563
    %v565 = vmul.f32 %v551, 1.442695
    %v566 = vpow.pop %v565
    %v567 = vmul.f32 %v552, 1.442695
    %v568 = vpow.pop %v567
    %v569 = vsel %vm557, %v562, 0.0
    %v570 = vsel %vm558, %v564, 0.0
    %v571 = vsel %vm559, %v566, 0.0
    %v572 = vsel %vm560, %v568, 0.0
    %573 = vadd.xlane.f32.xlu0 %v569
    %v574 = vpop.xlane.xlu0 %573
    %575 = vadd.xlane.f32.xlu0 %v570
    %v576 = vpop.xlane.xlu0 %575
    %577 = vadd.xlane.f32.xlu0 %v571
    %v578 = vpop.xlane.xlu0 %577
    %579 = vadd.xlane.f32.xlu0 %v572
    %v580 = vpop.xlane.xlu0 %579
    %v581 = vmul.f32 %v541, 1.442695
    %v582 = vpow.pop %v581
    %v583 = vmul.f32 %v542, 1.442695
    %v584 = vpow.pop %v583
    %v585 = vmul.f32 %v543, 1.442695
    %v586 = vpow.pop %v585
    %v587 = vmul.f32 %v544, 1.442695
    %v588 = vpow.pop %v587
    %v589 = vadd.f32 %v574, %v582
    %v590 = vadd.f32 %v576, %v584
    %v591 = vadd.f32 %v578, %v586
    %v592 = vadd.f32 %v580, %v588
    %v593 = vadd.f32 %v589, 1e-06
    %v594 = vadd.f32 %v590, 1e-06
    %v595 = vadd.f32 %v591, 1e-06
    %v596 = vadd.f32 %v592, 1e-06
    %v597 = vlog2.pop %v593
    %v598 = vmul.f32 %v597, 0.6931472
    %v599 = vlog2.pop %v594
    %v600 = vmul.f32 %v599, 0.6931472
    %v601 = vlog2.pop %v595
    %v602 = vmul.f32 %v601, 0.6931472
    %v603 = vlog2.pop %v596
    %v604 = vmul.f32 %v603, 0.6931472
    %v605 = vsub.f32 %v598, %v541
    %v606 = vsub.f32 %v600, %v542
    %v607 = vsub.f32 %v602, %v543
    %v608 = vsub.f32 %v604, %v544
    %vm609 = vcmask 7168
    %v610 = vsel %vm609, %v605, 0.0
    %v611 = vsel %vm609, %v606, 0.0
    %v612 = vadd.f32 %v610, %v611
    %v613 = vsel %vm609, %v607, 0.0
    %v614 = vadd.f32 %v612, %v613
    %v615 = vsel %vm609, %v608, 0.0
    %v616 = vadd.f32 %v614, %v615
    %617 = vadd.xlane.f32.xlu0 %v616
    %v618 = vpop.xlane.xlu0 %617
    %v619 = vrot.slane %v618, 4
    %v620 = vadd.f32 %v618, %v619
    %v621 = vrot.slane %v620, 2
    %v622 = vadd.f32 %v620, %v621
    %v623 = vrot.slane %v622, 1
    %v624 = vadd.f32 %v622, %v623
    %s625 = vtos %v624
    %s626 = smul.f32 %s625, 0.03125
    %s627 = scalar_lea.smem [#allocation7], 0
    %628 = sst [smem:[%s627]] %s626
    // Predicated region
    $region18: #{tpu_custom_call.1} parent=1 // pred_check
      _
    $region19: #{tpu_custom_call.1} parent=1 // pred_check_branch
      %630 = sbr.rel (0) target = $region21
    $region20: #{tpu_custom_call.1} parent=1 // pred_region
      %s632 = ssub.s32 16, 16
      %633 = vsyncadd [#allocation6], %s632
      %636 = dma.smem_to_hbm [#allocation7], 16, %s3, [#allocation6]
    $region21: #{tpu_custom_call.1} parent=1 // pred_fallthru
      _
    // Predicated region
    $region22: #{tpu_custom_call.1} parent=1 // pred_check
      _
    $region23: #{tpu_custom_call.1} parent=1 // pred_check_branch
      %638 = sbr.rel (0) target = $region25
    $region24: #{tpu_custom_call.1} parent=1 // pred_region
      %639 = dma.done [#allocation6], 16
    $region25: #{tpu_custom_call.1} parent=1 // pred_fallthru
      _
    %640 = sfence
    %641 = vsyncpa [#allocation5], 1
    %642 = vsyncpa [#allocation6], 1

</llo_original>
